<compile_context>
chip_gen: v5e
topology: v5e:2x2
jax: 0.10.0
libtpu: 0.0.40
codegen_flags: <defaults>
</compile_context>

<pallas_src>
import functools

import jax
import jax.numpy as jnp
from jax.experimental import pallas as pl
from jax.experimental.pallas import tpu as pltpu

D_IN = 768
D_H1 = 256
D_H2 = 128
LANE = 128
ROW_ALIGN = 16          # bf16 packs 2 rows/sublane -> native (16, 128) tiles
SPLIT_THRESHOLD = 512   # min batch before forcing >= 2 grid steps (v7x megacore)


def _round_up(n, m):
    return ((n + m - 1) // m) * m


def clip_mlp_kernel(x_ref, w1_ref, b1_ref, w2_ref, b2_ref, w3_ref, b3_ref, o_ref):
    # x arrives as bf16; bf16 x bf16 matmuls with f32 accumulation.
    x = x_ref[...]

    # fc1 + ReLU
    h1 = jnp.dot(x, w1_ref[...], preferred_element_type=jnp.float32) + b1_ref[...]
    h1 = jnp.maximum(h1, 0.0).astype(jnp.bfloat16)

    # fc2 + ReLU
    h2 = jnp.dot(h1, w2_ref[...], preferred_element_type=jnp.float32) + b2_ref[...]
    h2 = jnp.maximum(h2, 0.0).astype(jnp.bfloat16)

    # fc3 (no activation); lane-dense (padded to 128) bf16 store.
    o_ref[...] = (
        jnp.dot(h2, w3_ref[...], preferred_element_type=jnp.float32) + b3_ref[...]
    ).astype(o_ref.dtype)


@functools.partial(jax.jit, static_argnames=("tile_b",))
def clip_mlp(x, w1, b1, w2, b2, w3, b3, *, tile_b=2048):
    """Fused 3-layer MLP (768 -> 256 -> 128 -> output_dim), batch-tiled.

    Returns a bf16 (B, output_dim) array (precision is bf16-limited by the
    bf16 weights/activations regardless of output dtype).
    """
    B = x.shape[0]
    out_dim = w3.shape[1]
    out_pad = _round_up(out_dim, LANE)

    # ---- batch tile selection -------------------------------------------
    # Multiple of 16 rows (bf16 sublane packing), capped at tile_b.
    tb = min(tile_b, _round_up(max(B, 1), ROW_ALIGN))
    # v7x has 2 TensorCores: once the batch is large enough, cap the tile at
    # ceil(B/2) so the "parallel" grid axis keeps >= 2 steps and both cores
    # get work (no-op on single-TC v5e/v6e, and for B > tile_b the grid
    # already has >= 2 steps).
    if B >= SPLIT_THRESHOLD:
        tb = min(tb, _round_up((B + 1) // 2, ROW_ALIGN))
    b_pad = _round_up(B, tb)
    grid = (b_pad // tb,)

    # ---- operand preparation (avoid full-array pad/cast of x) ------------
    xb = x if x.dtype == jnp.bfloat16 else x.astype(jnp.bfloat16)
    if b_pad != B:
        # Only the ragged tail (< tb rows) is padded; aligned bf16 inputs are
        # passed straight through with no extra HBM pass.
        xb = jnp.concatenate(
            [xb, jnp.zeros((b_pad - B, D_IN), jnp.bfloat16)], axis=0
        )

    w1b = w1.astype(jnp.bfloat16)
    w2b = w2.astype(jnp.bfloat16)
    # Pad fc3 to 128 output lanes (zero-filled) for lane-dense stores.
    w3b = jnp.zeros((D_H2, out_pad), jnp.bfloat16).at[:, :out_dim].set(
        w3.astype(jnp.bfloat16)
    )
    b1f = b1.reshape(1, D_H1).astype(jnp.float32)
    b2f = b2.reshape(1, D_H2).astype(jnp.float32)
    b3f = jnp.zeros((1, out_pad), jnp.float32).at[:, :out_dim].set(
        b3.reshape(1, out_dim).astype(jnp.float32)
    )

    # ---- VMEM budget (generation-aware: must fit v7x's 64 MiB physical) ---
    weight_bytes = (D_IN * D_H1 + D_H1 * D_H2 + D_H2 * out_pad) * 2
    bias_bytes = (D_H1 + D_H2 + out_pad) * 4
    per_step_bytes = (
        2 * tb * D_IN * 2                     # x tile, double-buffered bf16
        + 2 * tb * out_pad * 2                # out tile, double-buffered bf16
        + 2 * (weight_bytes + bias_bytes)     # resident weights/biases
        + tb * (D_H1 * (4 + 2) + D_H2 * (4 + 2) + out_pad * 4)  # intermediates
    )
    vmem_limit = int(min(max(2 * per_step_bytes, 32 << 20), 56 << 20))

    resident = lambda shape: pl.BlockSpec(shape, lambda i: (0, 0))

    flops = 2 * b_pad * (D_IN * D_H1 + D_H1 * D_H2 + D_H2 * out_pad)
    bytes_accessed = (
        b_pad * D_IN * 2            # x (bf16)
        + weight_bytes              # weights (bf16)
        + bias_bytes                # biases (f32)
        + b_pad * out_pad * 2       # output (bf16)
    )

    out = pl.pallas_call(
        clip_mlp_kernel,
        out_shape=jax.ShapeDtypeStruct((b_pad, out_pad), jnp.bfloat16),
        grid=grid,
        in_specs=[
            pl.BlockSpec((tb, D_IN), lambda i: (i, 0)),   # x: batch-tiled
            resident((D_IN, D_H1)),                       # w1
            resident((1, D_H1)),                          # b1
            resident((D_H1, D_H2)),                       # w2
            resident((1, D_H2)),                          # b2
            resident((D_H2, out_pad)),                    # w3 (padded)
            resident((1, out_pad)),                       # b3 (padded)
        ],
        out_specs=pl.BlockSpec((tb, out_pad), lambda i: (i, 0)),
        compiler_params=pltpu.CompilerParams(
            dimension_semantics=("parallel",),
            vmem_limit_bytes=vmem_limit,
        ),
        cost_estimate=pl.CostEstimate(
            flops=flops, transcendentals=0, bytes_accessed=bytes_accessed
        ),
    )(xb, w1b, b1f, w2b, b2f, w3b, b3f)

    return out[:B, :out_dim]


def init_params(key, output_dim):
    """Deterministic synthetic parameters matching nn.Linear shapes."""
    ks = jax.random.split(key, 6)

    def linear(kw, kb, fan_in, fan_out):
        bound = 1.0 / jnp.sqrt(fan_in)
        w = jax.random.uniform(kw, (fan_in, fan_out), jnp.float32, -bound, bound)
        b = jax.random.uniform(kb, (1, fan_out), jnp.float32, -bound, bound)
        return w, b

    w1, b1 = linear(ks[0], ks[1], D_IN, D_H1)
    w2, b2 = linear(ks[2], ks[3], D_H1, D_H2)
    w3, b3 = linear(ks[4], ks[5], D_H2, output_dim)
    return w1, b1, w2, b2, w3, b3


if __name__ == "__main__":
    key = jax.random.PRNGKey(0)
    k_x, k_p = jax.random.split(key)

    B = 8
    OUTPUT_DIM = 16

    # Synthetic CLIP image features (what encode_image would emit), bf16.
    x_feats = jax.random.normal(k_x, (B, D_IN), dtype=jnp.bfloat16)

    w1, b1, w2, b2, w3, b3 = init_params(k_p, OUTPUT_DIM)

    out = clip_mlp(x_feats, w1, b1, w2, b2, w3, b3)
    out = jax.block_until_ready(out)

    # Pure-JAX f32 reference (kernel uses bf16 inputs/weights/output with f32
    # accumulation, so tolerance is loosened accordingly).
    xf = x_feats.astype(jnp.float32)
    ref = jnp.maximum(xf @ w1 + b1, 0.0)
    ref = jnp.maximum(ref @ w2 + b2, 0.0)
    ref = ref @ w3 + b3

    assert out.shape == (B, OUTPUT_DIM)
    assert out.dtype == jnp.bfloat16
    assert jnp.allclose(out.astype(jnp.float32), ref, atol=5e-2, rtol=5e-2), (
        float(jnp.max(jnp.abs(out.astype(jnp.float32) - ref)))
    )

    print("KERNEL_OK")
</pallas_src>

<mosaic_0001>
module attributes {stable_mosaic.version = 11 : i64} {
  func.func @clip_mlp_kernel(%arg0: i32, %arg1: memref<16x768xbf16, #tpu.memory_space<vmem>>, %arg2: memref<768x256xbf16, #tpu.memory_space<vmem>>, %arg3: memref<1x256xf32, #tpu.memory_space<vmem>>, %arg4: memref<256x128xbf16, #tpu.memory_space<vmem>>, %arg5: memref<1x128xf32, #tpu.memory_space<vmem>>, %arg6: memref<128x128xbf16, #tpu.memory_space<vmem>>, %arg7: memref<1x128xf32, #tpu.memory_space<vmem>>, %arg8: memref<16x128xbf16, #tpu.memory_space<vmem>>) attributes {dimension_semantics = [#tpu.dimension_semantics<parallel>], iteration_bounds = array<i64: 1>, scalar_prefetch = 0 : i64, scratch_operands = 0 : i64, tpu.core_type = #tpu.core_type<tc>, window_params = [{transform_indices = @transform_0, window_bounds = array<i64: 16, 768>}, {pipeline_mode = #tpu.pipeline_mode<synchronous>, transform_indices = @transform_1, window_bounds = array<i64: 768, 256>}, {pipeline_mode = #tpu.pipeline_mode<synchronous>, transform_indices = @transform_2, window_bounds = array<i64: 1, 256>}, {pipeline_mode = #tpu.pipeline_mode<synchronous>, transform_indices = @transform_3, window_bounds = array<i64: 256, 128>}, {pipeline_mode = #tpu.pipeline_mode<synchronous>, transform_indices = @transform_4, window_bounds = array<i64: 1, 128>}, {pipeline_mode = #tpu.pipeline_mode<synchronous>, transform_indices = @transform_5, window_bounds = array<i64: 128, 128>}, {pipeline_mode = #tpu.pipeline_mode<synchronous>, transform_indices = @transform_6, window_bounds = array<i64: 1, 128>}, {transform_indices = @transform_7, window_bounds = array<i64: 16, 128>}]} {
    %c0 = arith.constant 0 : index
    %c0_0 = arith.constant 0 : index
    %0 = vector.load %arg1[%c0, %c0_0] : memref<16x768xbf16, #tpu.memory_space<vmem>>, vector<16x768xbf16>
    %c0_1 = arith.constant 0 : index
    %c0_2 = arith.constant 0 : index
    %1 = vector.load %arg2[%c0_1, %c0_2] : memref<768x256xbf16, #tpu.memory_space<vmem>>, vector<768x256xbf16>
    %cst = arith.constant dense<0.000000e+00> : vector<16x256xf32>
    %2 = tpu.matmul %0, %1, %cst {dimension_numbers = #tpu.dot_dimension_numbers<[1], [0], [0], [1], [0, 0, 1, 1], [], []>} : vector<16x768xbf16>, vector<768x256xbf16>, vector<16x256xf32> -> vector<16x256xf32>
    %c0_3 = arith.constant 0 : index
    %c0_4 = arith.constant 0 : index
    %3 = vector.load %arg3[%c0_3, %c0_4] : memref<1x256xf32, #tpu.memory_space<vmem>>, vector<1x256xf32>
    %4 = vector.broadcast %3 : vector<1x256xf32> to vector<16x256xf32>
    %5 = arith.addf %2, %4 : vector<16x256xf32>
    %cst_5 = arith.constant 0.000000e+00 : f32
    %6 = vector.broadcast %cst_5 : f32 to vector<16x256xf32>
    %7 = arith.maximumf %5, %6 : vector<16x256xf32>
    %8 = arith.truncf %7 : vector<16x256xf32> to vector<16x256xbf16>
    %c0_6 = arith.constant 0 : index
    %c0_7 = arith.constant 0 : index
    %9 = vector.load %arg4[%c0_6, %c0_7] : memref<256x128xbf16, #tpu.memory_space<vmem>>, vector<256x128xbf16>
    %cst_8 = arith.constant dense<0.000000e+00> : vector<16x128xf32>
    %10 = tpu.matmul %8, %9, %cst_8 {dimension_numbers = #tpu.dot_dimension_numbers<[1], [0], [0], [1], [0, 0, 1, 1], [], []>} : vector<16x256xbf16>, vector<256x128xbf16>, vector<16x128xf32> -> vector<16x128xf32>
    %c0_9 = arith.constant 0 : index
    %c0_10 = arith.constant 0 : index
    %11 = vector.load %arg5[%c0_9, %c0_10] : memref<1x128xf32, #tpu.memory_space<vmem>>, vector<1x128xf32>
    %12 = vector.broadcast %11 : vector<1x128xf32> to vector<16x128xf32>
    %13 = arith.addf %10, %12 : vector<16x128xf32>
    %cst_11 = arith.constant 0.000000e+00 : f32
    %14 = vector.broadcast %cst_11 : f32 to vector<16x128xf32>
    %15 = arith.maximumf %13, %14 : vector<16x128xf32>
    %16 = arith.truncf %15 : vector<16x128xf32> to vector<16x128xbf16>
    %c0_12 = arith.constant 0 : index
    %c0_13 = arith.constant 0 : index
    %17 = vector.load %arg6[%c0_12, %c0_13] : memref<128x128xbf16, #tpu.memory_space<vmem>>, vector<128x128xbf16>
    %cst_14 = arith.constant dense<0.000000e+00> : vector<16x128xf32>
    %18 = tpu.matmul %16, %17, %cst_14 {dimension_numbers = #tpu.dot_dimension_numbers<[1], [0], [0], [1], [0, 0, 1, 1], [], []>} : vector<16x128xbf16>, vector<128x128xbf16>, vector<16x128xf32> -> vector<16x128xf32>
    %c0_15 = arith.constant 0 : index
    %c0_16 = arith.constant 0 : index
    %19 = vector.load %arg7[%c0_15, %c0_16] : memref<1x128xf32, #tpu.memory_space<vmem>>, vector<1x128xf32>
    %20 = vector.broadcast %19 : vector<1x128xf32> to vector<16x128xf32>
    %21 = arith.addf %18, %20 : vector<16x128xf32>
    %22 = arith.truncf %21 : vector<16x128xf32> to vector<16x128xbf16>
    %c0_17 = arith.constant 0 : index
    %c0_18 = arith.constant 0 : index
    %23 = vector.load %arg8[%c0_17, %c0_18] : memref<16x128xbf16, #tpu.memory_space<vmem>>, vector<16x128xbf16>
    tpu.vector_store %arg8[%c0_17, %c0_18], %22 {strides = array<i32>} : memref<16x128xbf16, #tpu.memory_space<vmem>>, vector<16x128xbf16>,
    return
  }
  func.func @transform_0(%arg0: i32) -> (i32, i32) {
    %c0_i32 = arith.constant 0 : i32
    %c0_i32_0 = arith.constant 0 : i32
    return %arg0, %c0_i32 : i32, i32
  }
  func.func @transform_1(%arg0: i32) -> (i32, i32) {
    %c0_i32 = arith.constant 0 : i32
    %c0_i32_0 = arith.constant 0 : i32
    %c0_i32_1 = arith.constant 0 : i32
    return %c0_i32, %c0_i32_0 : i32, i32
  }
  func.func @transform_2(%arg0: i32) -> (i32, i32) {
    %c0_i32 = arith.constant 0 : i32
    %c0_i32_0 = arith.constant 0 : i32
    %c0_i32_1 = arith.constant 0 : i32
    return %c0_i32, %c0_i32_0 : i32, i32
  }
  func.func @transform_3(%arg0: i32) -> (i32, i32) {
    %c0_i32 = arith.constant 0 : i32
    %c0_i32_0 = arith.constant 0 : i32
    %c0_i32_1 = arith.constant 0 : i32
    return %c0_i32, %c0_i32_0 : i32, i32
  }
  func.func @transform_4(%arg0: i32) -> (i32, i32) {
    %c0_i32 = arith.constant 0 : i32
    %c0_i32_0 = arith.constant 0 : i32
    %c0_i32_1 = arith.constant 0 : i32
    return %c0_i32, %c0_i32_0 : i32, i32
  }
  func.func @transform_5(%arg0: i32) -> (i32, i32) {
    %c0_i32 = arith.constant 0 : i32
    %c0_i32_0 = arith.constant 0 : i32
    %c0_i32_1 = arith.constant 0 : i32
    return %c0_i32, %c0_i32_0 : i32, i32
  }
  func.func @transform_6(%arg0: i32) -> (i32, i32) {
    %c0_i32 = arith.constant 0 : i32
    %c0_i32_0 = arith.constant 0 : i32
    %c0_i32_1 = arith.constant 0 : i32
    return %c0_i32, %c0_i32_0 : i32, i32
  }
  func.func @transform_7(%arg0: i32) -> (i32, i32) {
    %c0_i32 = arith.constant 0 : i32
    %c0_i32_0 = arith.constant 0 : i32
    return %arg0, %c0_i32 : i32, i32
  }
}

</mosaic_0001>

<llo_original>
// kernel: clip_mlp.1
$region0: #{clip_mlp.1}
  #allocation0 [shape = 'u32[]', space=smem, size = 0x4, offset = 0x4, fixed_abs, tag = 'smem constant byte address 0x4 - core index']
  #allocation1 [shape = 'u32[72,128]{1,0:T(1,128)}', space=vmem, size = 0x9000, scoped, tag = 'internal scratch']
  %s0 = inlined_call_operand.vmem [shape: bf16[16,768], index: 0, kind: input, shape index: {}]
  %s1 = inlined_call_operand.vmem [shape: bf16[768,256], index: 1, kind: input, shape index: {}]
  %s2 = inlined_call_operand.vmem [shape: f32[1,256], index: 2, kind: input, shape index: {}]
  %s3 = inlined_call_operand.vmem [shape: bf16[256,128], index: 3, kind: input, shape index: {}]
  %s4 = inlined_call_operand.vmem [shape: f32[1,128], index: 4, kind: input, shape index: {}]
  %s5 = inlined_call_operand.vmem [shape: bf16[128,128], index: 5, kind: input, shape index: {}]
  %s6 = inlined_call_operand.vmem [shape: f32[1,128], index: 6, kind: input, shape index: {}]
  %s7 = inlined_call_operand.vmem [shape: bf16[16,128], index: 7, kind: output, shape index: {}]
  %s8 = sld [smem:[#allocation0]]
  $region38: #{clip_mlp.1} parent=0
    _
  %s10 = ssub.s32 1, %s8
  %s11 = scalar_select 0, %s10, %s8
  // Predicated region
  $region2: #{clip_mlp.1} parent=0 // pred_check
    _
  $region3: #{clip_mlp.1} parent=0 // pred_check_branch
    %13 = sbr.rel (0) target = $region5
  $region4: #{clip_mlp.1} parent=0 // pred_region
    _
  $region5: #{clip_mlp.1} parent=0 // pred_fallthru
    _
  // Predicated region
  $region6: #{clip_mlp.1} parent=0 // pred_check
    _
  $region7: #{clip_mlp.1} parent=0 // pred_check_branch
    %15 = sbr.rel (0) target = $region9
  $region8: #{clip_mlp.1} parent=0 // pred_region
    _
  $region9: #{clip_mlp.1} parent=0 // pred_fallthru
    _
  // Predicated region
  $region10: #{clip_mlp.1} parent=0 // pred_check
    _
  $region11: #{clip_mlp.1} parent=0 // pred_check_branch
    %17 = sbr.rel (0) target = $region13
  $region12: #{clip_mlp.1} parent=0 // pred_region
    _
  $region13: #{clip_mlp.1} parent=0 // pred_fallthru
    _
  // Predicated region
  $region14: #{clip_mlp.1} parent=0 // pred_check
    _
  $region15: #{clip_mlp.1} parent=0 // pred_check_branch
    %19 = sbr.rel (0) target = $region17
  $region16: #{clip_mlp.1} parent=0 // pred_region
    _
  $region17: #{clip_mlp.1} parent=0 // pred_fallthru
    _
  // Predicated region
  $region18: #{clip_mlp.1} parent=0 // pred_check
    _
  $region19: #{clip_mlp.1} parent=0 // pred_check_branch
    %21 = sbr.rel (0) target = $region21
  $region20: #{clip_mlp.1} parent=0 // pred_region
    _
  $region21: #{clip_mlp.1} parent=0 // pred_fallthru
    _
  // Predicated region
  $region22: #{clip_mlp.1} parent=0 // pred_check
    _
  $region23: #{clip_mlp.1} parent=0 // pred_check_branch
    %23 = sbr.rel (0) target = $region25
  $region24: #{clip_mlp.1} parent=0 // pred_region
    _
  $region25: #{clip_mlp.1} parent=0 // pred_fallthru
    _
  // Predicated region
  $region26: #{clip_mlp.1} parent=0 // pred_check
    _
  $region27: #{clip_mlp.1} parent=0 // pred_check_branch
    %25 = sbr.rel (0) target = $region29
  $region28: #{clip_mlp.1} parent=0 // pred_region
    _
  $region29: #{clip_mlp.1} parent=0 // pred_fallthru
    _
  %v26 = vld [vmem:[%s0] sm:$0xff]
  %v27 = vld [vmem:[%s0 + $0x8] sm:$0xff]
  %v28 = vld [vmem:[%s0 + $0x10] sm:$0xff]
  %v29 = vld [vmem:[%s0 + $0x18] sm:$0xff]
  %v30 = vld [vmem:[%s0 + $0x20] sm:$0xff]
  %v31 = vld [vmem:[%s0 + $0x28] sm:$0xff]
  %v32 = vld [vmem:[%s1] sm:$0xff]
  %v33 = vld [vmem:[%s1 + $0x8] sm:$0xff]
  %v34 = vld [vmem:[%s1 + $0x10] sm:$0xff]
  %v35 = vld [vmem:[%s1 + $0x18] sm:$0xff]
  %v36 = vld [vmem:[%s1 + $0x20] sm:$0xff]
  %v37 = vld [vmem:[%s1 + $0x28] sm:$0xff]
  %v38 = vld [vmem:[%s1 + $0x30] sm:$0xff]
  %v39 = vld [vmem:[%s1 + $0x38] sm:$0xff]
  %v40 = vld [vmem:[%s1 + $0x40] sm:$0xff]
  %v41 = vld [vmem:[%s1 + $0x48] sm:$0xff]
  %v42 = vld [vmem:[%s1 + $0x50] sm:$0xff]
  %v43 = vld [vmem:[%s1 + $0x58] sm:$0xff]
  %v44 = vld [vmem:[%s1 + $0x60] sm:$0xff]
  %v45 = vld [vmem:[%s1 + $0x68] sm:$0xff]
  %v46 = vld [vmem:[%s1 + $0x70] sm:$0xff]
  %v47 = vld [vmem:[%s1 + $0x78] sm:$0xff]
  %v48 = vld [vmem:[%s1 + $0x80] sm:$0xff]
  %v49 = vld [vmem:[%s1 + $0x88] sm:$0xff]
  %v50 = vld [vmem:[%s1 + $0x90] sm:$0xff]
  %v51 = vld [vmem:[%s1 + $0x98] sm:$0xff]
  %v52 = vld [vmem:[%s1 + $0xa0] sm:$0xff]
  %v53 = vld [vmem:[%s1 + $0xa8] sm:$0xff]
  %v54 = vld [vmem:[%s1 + $0xb0] sm:$0xff]
  %v55 = vld [vmem:[%s1 + $0xb8] sm:$0xff]
  %v56 = vld [vmem:[%s1 + $0xc0] sm:$0xff]
  %v57 = vld [vmem:[%s1 + $0xc8] sm:$0xff]
  %v58 = vld [vmem:[%s1 + $0xd0] sm:$0xff]
  %v59 = vld [vmem:[%s1 + $0xd8] sm:$0xff]
  %v60 = vld [vmem:[%s1 + $0xe0] sm:$0xff]
  %v61 = vld [vmem:[%s1 + $0xe8] sm:$0xff]
  %v62 = vld [vmem:[%s1 + $0xf0] sm:$0xff]
  %v63 = vld [vmem:[%s1 + $0xf8] sm:$0xff]
  %v64 = vld [vmem:[%s1 + $0x100] sm:$0xff]
  %v65 = vld [vmem:[%s1 + $0x108] sm:$0xff]
  %v66 = vld [vmem:[%s1 + $0x110] sm:$0xff]
  %v67 = vld [vmem:[%s1 + $0x118] sm:$0xff]
  %v68 = vld [vmem:[%s1 + $0x120] sm:$0xff]
  %v69 = vld [vmem:[%s1 + $0x128] sm:$0xff]
  %v70 = vld [vmem:[%s1 + $0x130] sm:$0xff]
  %v71 = vld [vmem:[%s1 + $0x138] sm:$0xff]
  %v72 = vld [vmem:[%s1 + $0x140] sm:$0xff]
  %v73 = vld [vmem:[%s1 + $0x148] sm:$0xff]
  %v74 = vld [vmem:[%s1 + $0x150] sm:$0xff]
  %v75 = vld [vmem:[%s1 + $0x158] sm:$0xff]
  %v76 = vld [vmem:[%s1 + $0x160] sm:$0xff]
  %v77 = vld [vmem:[%s1 + $0x168] sm:$0xff]
  %v78 = vld [vmem:[%s1 + $0x170] sm:$0xff]
  %v79 = vld [vmem:[%s1 + $0x178] sm:$0xff]
  %v80 = vld [vmem:[%s1 + $0x180] sm:$0xff]
  %v81 = vld [vmem:[%s1 + $0x188] sm:$0xff]
  %v82 = vld [vmem:[%s1 + $0x190] sm:$0xff]
  %v83 = vld [vmem:[%s1 + $0x198] sm:$0xff]
  %v84 = vld [vmem:[%s1 + $0x1a0] sm:$0xff]
  %v85 = vld [vmem:[%s1 + $0x1a8] sm:$0xff]
  %v86 = vld [vmem:[%s1 + $0x1b0] sm:$0xff]
  %v87 = vld [vmem:[%s1 + $0x1b8] sm:$0xff]
  %v88 = vld [vmem:[%s1 + $0x1c0] sm:$0xff]
  %v89 = vld [vmem:[%s1 + $0x1c8] sm:$0xff]
  %v90 = vld [vmem:[%s1 + $0x1d0] sm:$0xff]
  %v91 = vld [vmem:[%s1 + $0x1d8] sm:$0xff]
  %v92 = vld [vmem:[%s1 + $0x1e0] sm:$0xff]
  %v93 = vld [vmem:[%s1 + $0x1e8] sm:$0xff]
  %v94 = vld [vmem:[%s1 + $0x1f0] sm:$0xff]
  %v95 = vld [vmem:[%s1 + $0x1f8] sm:$0xff]
  %v96 = vld [vmem:[%s1 + $0x200] sm:$0xff]
  %v97 = vld [vmem:[%s1 + $0x208] sm:$0xff]
  %v98 = vld [vmem:[%s1 + $0x210] sm:$0xff]
  %v99 = vld [vmem:[%s1 + $0x218] sm:$0xff]
  %v100 = vld [vmem:[%s1 + $0x220] sm:$0xff]
  %v101 = vld [vmem:[%s1 + $0x228] sm:$0xff]
  %v102 = vld [vmem:[%s1 + $0x230] sm:$0xff]
  %v103 = vld [vmem:[%s1 + $0x238] sm:$0xff]
  %v104 = vld [vmem:[%s1 + $0x240] sm:$0xff]
  %v105 = vld [vmem:[%s1 + $0x248] sm:$0xff]
  %v106 = vld [vmem:[%s1 + $0x250] sm:$0xff]
  %v107 = vld [vmem:[%s1 + $0x258] sm:$0xff]
  %v108 = vld [vmem:[%s1 + $0x260] sm:$0xff]
  %v109 = vld [vmem:[%s1 + $0x268] sm:$0xff]
  %v110 = vld [vmem:[%s1 + $0x270] sm:$0xff]
  %v111 = vld [vmem:[%s1 + $0x278] sm:$0xff]
  %v112 = vld [vmem:[%s1 + $0x280] sm:$0xff]
  %v113 = vld [vmem:[%s1 + $0x288] sm:$0xff]
  %v114 = vld [vmem:[%s1 + $0x290] sm:$0xff]
  %v115 = vld [vmem:[%s1 + $0x298] sm:$0xff]
  %v116 = vld [vmem:[%s1 + $0x2a0] sm:$0xff]
  %v117 = vld [vmem:[%s1 + $0x2a8] sm:$0xff]
  %v118 = vld [vmem:[%s1 + $0x2b0] sm:$0xff]
  %v119 = vld [vmem:[%s1 + $0x2b8] sm:$0xff]
  %v120 = vld [vmem:[%s1 + $0x2c0] sm:$0xff]
  %v121 = vld [vmem:[%s1 + $0x2c8] sm:$0xff]
  %v122 = vld [vmem:[%s1 + $0x2d0] sm:$0xff]
  %v123 = vld [vmem:[%s1 + $0x2d8] sm:$0xff]
  %v124 = vld [vmem:[%s1 + $0x2e0] sm:$0xff]
  %v125 = vld [vmem:[%s1 + $0x2e8] sm:$0xff]
  %v126 = vld [vmem:[%s1 + $0x2f0] sm:$0xff]
  %v127 = vld [vmem:[%s1 + $0x2f8] sm:$0xff]
  %v128 = vld [vmem:[%s2] sm:$0x3]
  %v130 = vperm.slane %v128, 0
  %v131 = vperm.slane %v128, 1
  %v140 = vunpack.c.l.b16 %v26
  %v141 = vunpack.c.h.b16 %v26
  %v142 = vunpack.c.l.b16 %v27
  %v143 = vunpack.c.h.b16 %v27
  %v144 = vunpack.c.l.b16 %v28
  %v145 = vunpack.c.h.b16 %v28
  %v146 = vunpack.c.l.b16 %v29
  %v147 = vunpack.c.h.b16 %v29
  %v148 = vunpack.c.l.b16 %v30
  %v149 = vunpack.c.h.b16 %v30
  %v150 = vunpack.c.l.b16 %v31
  %v151 = vunpack.c.h.b16 %v31
  %v152 = vpack.c.b16 %v146, %v140
  %v153 = vpack.c.b16 %v147, %v141
  %v154 = vpack.c.b16 %v148, %v142
  %v155 = vpack.c.b16 %v149, %v143
  %v156 = vpack.c.b16 %v150, %v144
  %v157 = vpack.c.b16 %v151, %v145
  %v260 = vunpack.c.l.b16 %v32
  %v261 = vunpack.c.h.b16 %v32
  %v262 = vunpack.c.l.b16 %v33
  %v263 = vunpack.c.h.b16 %v33
  %v264 = vunpack.c.l.b16 %v34
  %v265 = vunpack.c.h.b16 %v34
  %v266 = vunpack.c.l.b16 %v35
  %v267 = vunpack.c.h.b16 %v35
  %v268 = vunpack.c.l.b16 %v36
  %v269 = vunpack.c.h.b16 %v36
  %v270 = vunpack.c.l.b16 %v37
  %v271 = vunpack.c.h.b16 %v37
  %v272 = vunpack.c.l.b16 %v38
  %v273 = vunpack.c.h.b16 %v38
  %v274 = vunpack.c.l.b16 %v39
  %v275 = vunpack.c.h.b16 %v39
  %v276 = vunpack.c.l.b16 %v40
  %v277 = vunpack.c.h.b16 %v40
  %v278 = vunpack.c.l.b16 %v41
  %v279 = vunpack.c.h.b16 %v41
  %v280 = vunpack.c.l.b16 %v42
  %v281 = vunpack.c.h.b16 %v42
  %v282 = vunpack.c.l.b16 %v43
  %v283 = vunpack.c.h.b16 %v43
  %v284 = vunpack.c.l.b16 %v44
  %v285 = vunpack.c.h.b16 %v44
  %v286 = vunpack.c.l.b16 %v45
  %v287 = vunpack.c.h.b16 %v45
  %v288 = vunpack.c.l.b16 %v46
  %v289 = vunpack.c.h.b16 %v46
  %v290 = vunpack.c.l.b16 %v47
  %v291 = vunpack.c.h.b16 %v47
  %v292 = vunpack.c.l.b16 %v48
  %v293 = vunpack.c.h.b16 %v48
  %v294 = vunpack.c.l.b16 %v49
  %v295 = vunpack.c.h.b16 %v49
  %v296 = vunpack.c.l.b16 %v50
  %v297 = vunpack.c.h.b16 %v50
  %v298 = vunpack.c.l.b16 %v51
  %v299 = vunpack.c.h.b16 %v51
  %v300 = vunpack.c.l.b16 %v52
  %v301 = vunpack.c.h.b16 %v52
  %v302 = vunpack.c.l.b16 %v53
  %v303 = vunpack.c.h.b16 %v53
  %v304 = vunpack.c.l.b16 %v54
  %v305 = vunpack.c.h.b16 %v54
  %v306 = vunpack.c.l.b16 %v55
  %v307 = vunpack.c.h.b16 %v55
  %v308 = vunpack.c.l.b16 %v56
  %v309 = vunpack.c.h.b16 %v56
  %v310 = vunpack.c.l.b16 %v57
  %v311 = vunpack.c.h.b16 %v57
  %v312 = vunpack.c.l.b16 %v58
  %v313 = vunpack.c.h.b16 %v58
  %v314 = vunpack.c.l.b16 %v59
  %v315 = vunpack.c.h.b16 %v59
  %v316 = vunpack.c.l.b16 %v60
  %v317 = vunpack.c.h.b16 %v60
  %v318 = vunpack.c.l.b16 %v61
  %v319 = vunpack.c.h.b16 %v61
  %v320 = vunpack.c.l.b16 %v62
  %v321 = vunpack.c.h.b16 %v62
  %v322 = vunpack.c.l.b16 %v63
  %v323 = vunpack.c.h.b16 %v63
  %v324 = vunpack.c.l.b16 %v64
  %v325 = vunpack.c.h.b16 %v64
  %v326 = vunpack.c.l.b16 %v65
  %v327 = vunpack.c.h.b16 %v65
  %v328 = vunpack.c.l.b16 %v66
  %v329 = vunpack.c.h.b16 %v66
  %v330 = vunpack.c.l.b16 %v67
  %v331 = vunpack.c.h.b16 %v67
  %v332 = vunpack.c.l.b16 %v68
  %v333 = vunpack.c.h.b16 %v68
  %v334 = vunpack.c.l.b16 %v69
  %v335 = vunpack.c.h.b16 %v69
  %v336 = vunpack.c.l.b16 %v70
  %v337 = vunpack.c.h.b16 %v70
  %v338 = vunpack.c.l.b16 %v71
  %v339 = vunpack.c.h.b16 %v71
  %v340 = vunpack.c.l.b16 %v72
  %v341 = vunpack.c.h.b16 %v72
  %v342 = vunpack.c.l.b16 %v73
  %v343 = vunpack.c.h.b16 %v73
  %v344 = vunpack.c.l.b16 %v74
  %v345 = vunpack.c.h.b16 %v74
  %v346 = vunpack.c.l.b16 %v75
  %v347 = vunpack.c.h.b16 %v75
  %v348 = vunpack.c.l.b16 %v76
  %v349 = vunpack.c.h.b16 %v76
  %v350 = vunpack.c.l.b16 %v77
  %v351 = vunpack.c.h.b16 %v77
  %v352 = vunpack.c.l.b16 %v78
  %v353 = vunpack.c.h.b16 %v78
  %v354 = vunpack.c.l.b16 %v79
  %v355 = vunpack.c.h.b16 %v79
  %v356 = vunpack.c.l.b16 %v80
  %v357 = vunpack.c.h.b16 %v80
  %v358 = vunpack.c.l.b16 %v81
  %v359 = vunpack.c.h.b16 %v81
  %v360 = vunpack.c.l.b16 %v82
  %v361 = vunpack.c.h.b16 %v82
  %v362 = vunpack.c.l.b16 %v83
  %v363 = vunpack.c.h.b16 %v83
  %v364 = vunpack.c.l.b16 %v84
  %v365 = vunpack.c.h.b16 %v84
  %v366 = vunpack.c.l.b16 %v85
  %v367 = vunpack.c.h.b16 %v85
  %v368 = vunpack.c.l.b16 %v86
  %v369 = vunpack.c.h.b16 %v86
  %v370 = vunpack.c.l.b16 %v87
  %v371 = vunpack.c.h.b16 %v87
  %v372 = vunpack.c.l.b16 %v88
  %v373 = vunpack.c.h.b16 %v88
  %v374 = vunpack.c.l.b16 %v89
  %v375 = vunpack.c.h.b16 %v89
  %v376 = vunpack.c.l.b16 %v90
  %v377 = vunpack.c.h.b16 %v90
  %v378 = vunpack.c.l.b16 %v91
  %v379 = vunpack.c.h.b16 %v91
  %v380 = vunpack.c.l.b16 %v92
  %v381 = vunpack.c.h.b16 %v92
  %v382 = vunpack.c.l.b16 %v93
  %v383 = vunpack.c.h.b16 %v93
  %v384 = vunpack.c.l.b16 %v94
  %v385 = vunpack.c.h.b16 %v94
  %v386 = vunpack.c.l.b16 %v95
  %v387 = vunpack.c.h.b16 %v95
  %v388 = vunpack.c.l.b16 %v96
  %v389 = vunpack.c.h.b16 %v96
  %v390 = vunpack.c.l.b16 %v97
  %v391 = vunpack.c.h.b16 %v97
  %v392 = vunpack.c.l.b16 %v98
  %v393 = vunpack.c.h.b16 %v98
  %v394 = vunpack.c.l.b16 %v99
  %v395 = vunpack.c.h.b16 %v99
  %v396 = vunpack.c.l.b16 %v100
  %v397 = vunpack.c.h.b16 %v100
  %v398 = vunpack.c.l.b16 %v101
  %v399 = vunpack.c.h.b16 %v101
  %v400 = vunpack.c.l.b16 %v102
  %v401 = vunpack.c.h.b16 %v102
  %v402 = vunpack.c.l.b16 %v103
  %v403 = vunpack.c.h.b16 %v103
  %v404 = vunpack.c.l.b16 %v104
  %v405 = vunpack.c.h.b16 %v104
  %v406 = vunpack.c.l.b16 %v105
  %v407 = vunpack.c.h.b16 %v105
  %v408 = vunpack.c.l.b16 %v106
  %v409 = vunpack.c.h.b16 %v106
  %v410 = vunpack.c.l.b16 %v107
  %v411 = vunpack.c.h.b16 %v107
  %v412 = vunpack.c.l.b16 %v108
  %v413 = vunpack.c.h.b16 %v108
  %v414 = vunpack.c.l.b16 %v109
  %v415 = vunpack.c.h.b16 %v109
  %v416 = vunpack.c.l.b16 %v110
  %v417 = vunpack.c.h.b16 %v110
  %v418 = vunpack.c.l.b16 %v111
  %v419 = vunpack.c.h.b16 %v111
  %v420 = vunpack.c.l.b16 %v112
  %v421 = vunpack.c.h.b16 %v112
  %v422 = vunpack.c.l.b16 %v113
  %v423 = vunpack.c.h.b16 %v113
  %v424 = vunpack.c.l.b16 %v114
  %v425 = vunpack.c.h.b16 %v114
  %v426 = vunpack.c.l.b16 %v115
  %v427 = vunpack.c.h.b16 %v115
  %v428 = vunpack.c.l.b16 %v116
  %v429 = vunpack.c.h.b16 %v116
  %v430 = vunpack.c.l.b16 %v117
  %v431 = vunpack.c.h.b16 %v117
  %v432 = vunpack.c.l.b16 %v118
  %v433 = vunpack.c.h.b16 %v118
  %v434 = vunpack.c.l.b16 %v119
  %v435 = vunpack.c.h.b16 %v119
  %v436 = vunpack.c.l.b16 %v120
  %v437 = vunpack.c.h.b16 %v120
  %v438 = vunpack.c.l.b16 %v121
  %v439 = vunpack.c.h.b16 %v121
  %v440 = vunpack.c.l.b16 %v122
  %v441 = vunpack.c.h.b16 %v122
  %v442 = vunpack.c.l.b16 %v123
  %v443 = vunpack.c.h.b16 %v123
  %v444 = vunpack.c.l.b16 %v124
  %v445 = vunpack.c.h.b16 %v124
  %v446 = vunpack.c.l.b16 %v125
  %v447 = vunpack.c.h.b16 %v125
  %v448 = vunpack.c.l.b16 %v126
  %v449 = vunpack.c.h.b16 %v126
  %v450 = vunpack.c.l.b16 %v127
  %v451 = vunpack.c.h.b16 %v127
  %v452 = vpack.c.b16 %v262, %v260
  %v453 = vpack.c.b16 %v263, %v261
  %v454 = vpack.c.b16 %v266, %v264
  %v455 = vpack.c.b16 %v267, %v265
  %v456 = vpack.c.b16 %v270, %v268
  %v457 = vpack.c.b16 %v271, %v269
  %v458 = vpack.c.b16 %v274, %v272
  %v459 = vpack.c.b16 %v275, %v273
  %v460 = vpack.c.b16 %v278, %v276
  %v461 = vpack.c.b16 %v279, %v277
  %v462 = vpack.c.b16 %v282, %v280
  %v463 = vpack.c.b16 %v283, %v281
  %v464 = vpack.c.b16 %v286, %v284
  %v465 = vpack.c.b16 %v287, %v285
  %v466 = vpack.c.b16 %v290, %v288
  %v467 = vpack.c.b16 %v291, %v289
  %v468 = vpack.c.b16 %v294, %v292
  %v469 = vpack.c.b16 %v295, %v293
  %v470 = vpack.c.b16 %v298, %v296
  %v471 = vpack.c.b16 %v299, %v297
  %v472 = vpack.c.b16 %v302, %v300
  %v473 = vpack.c.b16 %v303, %v301
  %v474 = vpack.c.b16 %v306, %v304
  %v475 = vpack.c.b16 %v307, %v305
  %v476 = vpack.c.b16 %v310, %v308
  %v477 = vpack.c.b16 %v311, %v309
  %v478 = vpack.c.b16 %v314, %v312
  %v479 = vpack.c.b16 %v315, %v313
  %v480 = vpack.c.b16 %v318, %v316
  %v481 = vpack.c.b16 %v319, %v317
  %v482 = vpack.c.b16 %v322, %v320
  %v483 = vpack.c.b16 %v323, %v321
  %v484 = vpack.c.b16 %v326, %v324
  %v485 = vpack.c.b16 %v327, %v325
  %v486 = vpack.c.b16 %v330, %v328
  %v487 = vpack.c.b16 %v331, %v329
  %v488 = vpack.c.b16 %v334, %v332
  %v489 = vpack.c.b16 %v335, %v333
  %v490 = vpack.c.b16 %v338, %v336
  %v491 = vpack.c.b16 %v339, %v337
  %v492 = vpack.c.b16 %v342, %v340
  %v493 = vpack.c.b16 %v343, %v341
  %v494 = vpack.c.b16 %v346, %v344
  %v495 = vpack.c.b16 %v347, %v345
  %v496 = vpack.c.b16 %v350, %v348
  %v497 = vpack.c.b16 %v351, %v349
  %v498 = vpack.c.b16 %v354, %v352
  %v499 = vpack.c.b16 %v355, %v353
  %v500 = vpack.c.b16 %v358, %v356
  %v501 = vpack.c.b16 %v359, %v357
  %v502 = vpack.c.b16 %v362, %v360
  %v503 = vpack.c.b16 %v363, %v361
  %v504 = vpack.c.b16 %v366, %v364
  %v505 = vpack.c.b16 %v367, %v365
  %v506 = vpack.c.b16 %v370, %v368
  %v507 = vpack.c.b16 %v371, %v369
  %v508 = vpack.c.b16 %v374, %v372
  %v509 = vpack.c.b16 %v375, %v373
  %v510 = vpack.c.b16 %v378, %v376
  %v511 = vpack.c.b16 %v379, %v377
  %v512 = vpack.c.b16 %v382, %v380
  %v513 = vpack.c.b16 %v383, %v381
  %v514 = vpack.c.b16 %v386, %v384
  %v515 = vpack.c.b16 %v387, %v385
  %v516 = vpack.c.b16 %v390, %v388
  %v517 = vpack.c.b16 %v391, %v389
  %v518 = vpack.c.b16 %v394, %v392
  %v519 = vpack.c.b16 %v395, %v393
  %v520 = vpack.c.b16 %v398, %v396
  %v521 = vpack.c.b16 %v399, %v397
  %v522 = vpack.c.b16 %v402, %v400
  %v523 = vpack.c.b16 %v403, %v401
  %v524 = vpack.c.b16 %v406, %v404
  %v525 = vpack.c.b16 %v407, %v405
  %v526 = vpack.c.b16 %v410, %v408
  %v527 = vpack.c.b16 %v411, %v409
  %v528 = vpack.c.b16 %v414, %v412
  %v529 = vpack.c.b16 %v415, %v413
  %v530 = vpack.c.b16 %v418, %v416
  %v531 = vpack.c.b16 %v419, %v417
  %v532 = vpack.c.b16 %v422, %v420
  %v533 = vpack.c.b16 %v423, %v421
  %v534 = vpack.c.b16 %v426, %v424
  %v535 = vpack.c.b16 %v427, %v425
  %v536 = vpack.c.b16 %v430, %v428
  %v537 = vpack.c.b16 %v431, %v429
  %v538 = vpack.c.b16 %v434, %v432
  %v539 = vpack.c.b16 %v435, %v433
  %v540 = vpack.c.b16 %v438, %v436
  %v541 = vpack.c.b16 %v439, %v437
  %v542 = vpack.c.b16 %v442, %v440
  %v543 = vpack.c.b16 %v443, %v441
  %v544 = vpack.c.b16 %v446, %v444
  %v545 = vpack.c.b16 %v447, %v445
  %v546 = vpack.c.b16 %v450, %v448
  %v547 = vpack.c.b16 %v451, %v449
  %644 = vmatpush.bf16.msra.mxu0 %v466
  %645 = vmatpush.bf16.msra.mxu0 %v464
  %646 = vmatpush.bf16.msra.mxu0 %v462
  %647 = vmatpush.bf16.msra.mxu0 %v460
  %648 = vmatpush.bf16.msra.mxu0 %v458
  %649 = vmatpush.bf16.msra.mxu0 %v456
  %650 = vmatpush.bf16.msra.mxu0 %v454
  %651 = vmatpush.bf16.msra.mxu0 %v452
  %652 = vmatmul.bf16.gmra.mxu0 %v152
  %v653 = vpop.f32.mrf.mxu0
  %v654 = vadd.f32 %v130, %v653
  %v655 = vpop.f32.mrf.mxu0
  %v656 = vadd.f32 %v130, %v655
  %657 = vdwg.mxu0
  %658 = vmatpush.bf16.msra.mxu0 %v482
  %659 = vmatpush.bf16.msra.mxu0 %v480
  %660 = vmatpush.bf16.msra.mxu0 %v478
  %661 = vmatpush.bf16.msra.mxu0 %v476
  %662 = vmatpush.bf16.msra.mxu0 %v474
  %663 = vmatpush.bf16.msra.mxu0 %v472
  %664 = vmatpush.bf16.msra.mxu0 %v470
  %665 = vmatpush.bf16.msra.mxu0 %v468
  %666 = vmatmul.bf16.gmra.mxu0 %v153
  %v667 = vpop.f32.mrf.mxu0
  %v668 = vadd.f32 %v654, %v667
  %v669 = vpop.f32.mrf.mxu0
  %v670 = vadd.f32 %v656, %v669
  %671 = vdwg.mxu0
  %672 = vmatpush.bf16.msra.mxu0 %v498
  %673 = vmatpush.bf16.msra.mxu0 %v496
  %674 = vmatpush.bf16.msra.mxu0 %v494
  %675 = vmatpush.bf16.msra.mxu0 %v492
  %676 = vmatpush.bf16.msra.mxu0 %v490
  %677 = vmatpush.bf16.msra.mxu0 %v488
  %678 = vmatpush.bf16.msra.mxu0 %v486
  %679 = vmatpush.bf16.msra.mxu0 %v484
  %680 = vmatmul.bf16.gmra.mxu0 %v154
  %v681 = vpop.f32.mrf.mxu0
  %v682 = vadd.f32 %v668, %v681
  %v683 = vpop.f32.mrf.mxu0
  %v684 = vadd.f32 %v670, %v683
  %685 = vdwg.mxu0
  %686 = vmatpush.bf16.msra.mxu0 %v514
  %687 = vmatpush.bf16.msra.mxu0 %v512
  %688 = vmatpush.bf16.msra.mxu0 %v510
  %689 = vmatpush.bf16.msra.mxu0 %v508
  %690 = vmatpush.bf16.msra.mxu0 %v506
  %691 = vmatpush.bf16.msra.mxu0 %v504
  %692 = vmatpush.bf16.msra.mxu0 %v502
  %693 = vmatpush.bf16.msra.mxu0 %v500
  %694 = vmatmul.bf16.gmra.mxu0 %v155
  %v695 = vpop.f32.mrf.mxu0
  %v696 = vadd.f32 %v682, %v695
  %v697 = vpop.f32.mrf.mxu0
  %v698 = vadd.f32 %v684, %v697
  %699 = vdwg.mxu0
  %700 = vmatpush.bf16.msra.mxu0 %v530
  %701 = vmatpush.bf16.msra.mxu0 %v528
  %702 = vmatpush.bf16.msra.mxu0 %v526
  %703 = vmatpush.bf16.msra.mxu0 %v524
  %704 = vmatpush.bf16.msra.mxu0 %v522
  %705 = vmatpush.bf16.msra.mxu0 %v520
  %706 = vmatpush.bf16.msra.mxu0 %v518
  %707 = vmatpush.bf16.msra.mxu0 %v516
  %708 = vmatmul.bf16.gmra.mxu0 %v156
  %v709 = vpop.f32.mrf.mxu0
  %v710 = vadd.f32 %v696, %v709
  %v711 = vpop.f32.mrf.mxu0
  %v712 = vadd.f32 %v698, %v711
  %713 = vdwg.mxu0
  %714 = vmatpush.bf16.msra.mxu0 %v546
  %715 = vmatpush.bf16.msra.mxu0 %v544
  %716 = vmatpush.bf16.msra.mxu0 %v542
  %717 = vmatpush.bf16.msra.mxu0 %v540
  %718 = vmatpush.bf16.msra.mxu0 %v538
  %719 = vmatpush.bf16.msra.mxu0 %v536
  %720 = vmatpush.bf16.msra.mxu0 %v534
  %721 = vmatpush.bf16.msra.mxu0 %v532
  %722 = vmatmul.bf16.gmra.mxu0 %v157
  %v723 = vpop.f32.mrf.mxu0
  %v724 = vadd.f32 %v710, %v723
  %v725 = vpop.f32.mrf.mxu0
  %v726 = vadd.f32 %v712, %v725
  %727 = vdwg.mxu0
  %728 = vmatpush.bf16.msra.mxu0 %v467
  %729 = vmatpush.bf16.msra.mxu0 %v465
  %730 = vmatpush.bf16.msra.mxu0 %v463
  %731 = vmatpush.bf16.msra.mxu0 %v461
  %732 = vmatpush.bf16.msra.mxu0 %v459
  %733 = vmatpush.bf16.msra.mxu0 %v457
  %734 = vmatpush.bf16.msra.mxu0 %v455
  %735 = vmatpush.bf16.msra.mxu0 %v453
  %736 = vmatmul.bf16.gmra.mxu0 %v152
  %v737 = vpop.f32.mrf.mxu0
  %v738 = vadd.f32 %v131, %v737
  %v739 = vpop.f32.mrf.mxu0
  %v740 = vadd.f32 %v131, %v739
  %741 = vdwg.mxu0
  %742 = vmatpush.bf16.msra.mxu0 %v483
  %743 = vmatpush.bf16.msra.mxu0 %v481
  %744 = vmatpush.bf16.msra.mxu0 %v479
  %745 = vmatpush.bf16.msra.mxu0 %v477
  %746 = vmatpush.bf16.msra.mxu0 %v475
  %747 = vmatpush.bf16.msra.mxu0 %v473
  %748 = vmatpush.bf16.msra.mxu0 %v471
  %749 = vmatpush.bf16.msra.mxu0 %v469
  %750 = vmatmul.bf16.gmra.mxu0 %v153
  %v751 = vpop.f32.mrf.mxu0
  %v752 = vadd.f32 %v738, %v751
  %v753 = vpop.f32.mrf.mxu0
  %v754 = vadd.f32 %v740, %v753
  %755 = vdwg.mxu0
  %756 = vmatpush.bf16.msra.mxu0 %v499
  %757 = vmatpush.bf16.msra.mxu0 %v497
  %758 = vmatpush.bf16.msra.mxu0 %v495
  %759 = vmatpush.bf16.msra.mxu0 %v493
  %760 = vmatpush.bf16.msra.mxu0 %v491
  %761 = vmatpush.bf16.msra.mxu0 %v489
  %762 = vmatpush.bf16.msra.mxu0 %v487
  %763 = vmatpush.bf16.msra.mxu0 %v485
  %764 = vmatmul.bf16.gmra.mxu0 %v154
  %v765 = vpop.f32.mrf.mxu0
  %v766 = vadd.f32 %v752, %v765
  %v767 = vpop.f32.mrf.mxu0
  %v768 = vadd.f32 %v754, %v767
  %769 = vdwg.mxu0
  %770 = vmatpush.bf16.msra.mxu0 %v515
  %771 = vmatpush.bf16.msra.mxu0 %v513
  %772 = vmatpush.bf16.msra.mxu0 %v511
  %773 = vmatpush.bf16.msra.mxu0 %v509
  %774 = vmatpush.bf16.msra.mxu0 %v507
  %775 = vmatpush.bf16.msra.mxu0 %v505
  %776 = vmatpush.bf16.msra.mxu0 %v503
  %777 = vmatpush.bf16.msra.mxu0 %v501
  %778 = vmatmul.bf16.gmra.mxu0 %v155
  %v779 = vpop.f32.mrf.mxu0
  %v780 = vadd.f32 %v766, %v779
  %v781 = vpop.f32.mrf.mxu0
  %v782 = vadd.f32 %v768, %v781
  %783 = vdwg.mxu0
  %784 = vmatpush.bf16.msra.mxu0 %v531
  %785 = vmatpush.bf16.msra.mxu0 %v529
  %786 = vmatpush.bf16.msra.mxu0 %v527
  %787 = vmatpush.bf16.msra.mxu0 %v525
  %788 = vmatpush.bf16.msra.mxu0 %v523
  %789 = vmatpush.bf16.msra.mxu0 %v521
  %790 = vmatpush.bf16.msra.mxu0 %v519
  %791 = vmatpush.bf16.msra.mxu0 %v517
  %792 = vmatmul.bf16.gmra.mxu0 %v156
  %v793 = vpop.f32.mrf.mxu0
  %v794 = vadd.f32 %v780, %v793
  %v795 = vpop.f32.mrf.mxu0
  %v796 = vadd.f32 %v782, %v795
  %797 = vdwg.mxu0
  %798 = vmatpush.bf16.msra.mxu0 %v547
  %799 = vmatpush.bf16.msra.mxu0 %v545
  %800 = vmatpush.bf16.msra.mxu0 %v543
  %801 = vmatpush.bf16.msra.mxu0 %v541
  %802 = vmatpush.bf16.msra.mxu0 %v539
  %803 = vmatpush.bf16.msra.mxu0 %v537
  %804 = vmatpush.bf16.msra.mxu0 %v535
  %805 = vmatpush.bf16.msra.mxu0 %v533
  %806 = vmatmul.bf16.gmra.mxu0 %v157
  %v807 = vpop.f32.mrf.mxu0
  %v808 = vadd.f32 %v794, %v807
  %v809 = vpop.f32.mrf.mxu0
  %v810 = vadd.f32 %v796, %v809
  %811 = vdwg.mxu0
  %v812 = vmax.f32 %v724, 0.0
  %v813 = vmax.f32 %v808, 0.0
  %v814 = vmax.f32 %v726, 0.0
  %v815 = vmax.f32 %v810, 0.0
  %v816 = vpack.c.bf16 %v814, %v812
  %v817 = vpack.c.bf16 %v815, %v813
  %v818 = vld [vmem:[%s3] sm:$0xf]
  %v819 = vld [vmem:[%s3 + $0x4] sm:$0xf]
  %v820 = vld [vmem:[%s3 + $0x8] sm:$0xf]
  %v821 = vld [vmem:[%s3 + $0xc] sm:$0xf]
  %v822 = vld [vmem:[%s3 + $0x10] sm:$0xf]
  %v823 = vld [vmem:[%s3 + $0x14] sm:$0xf]
  %v824 = vld [vmem:[%s3 + $0x18] sm:$0xf]
  %v825 = vld [vmem:[%s3 + $0x1c] sm:$0xf]
  %v826 = vld [vmem:[%s3 + $0x20] sm:$0xf]
  %v827 = vld [vmem:[%s3 + $0x24] sm:$0xf]
  %v828 = vld [vmem:[%s3 + $0x28] sm:$0xf]
  %v829 = vld [vmem:[%s3 + $0x2c] sm:$0xf]
  %v830 = vld [vmem:[%s3 + $0x30] sm:$0xf]
  %v831 = vld [vmem:[%s3 + $0x34] sm:$0xf]
  %v832 = vld [vmem:[%s3 + $0x38] sm:$0xf]
  %v833 = vld [vmem:[%s3 + $0x3c] sm:$0xf]
  %v834 = vld [vmem:[%s3 + $0x40] sm:$0xf]
  %v835 = vld [vmem:[%s3 + $0x44] sm:$0xf]
  %v836 = vld [vmem:[%s3 + $0x48] sm:$0xf]
  %v837 = vld [vmem:[%s3 + $0x4c] sm:$0xf]
  %v838 = vld [vmem:[%s3 + $0x50] sm:$0xf]
  %v839 = vld [vmem:[%s3 + $0x54] sm:$0xf]
  %v840 = vld [vmem:[%s3 + $0x58] sm:$0xf]
  %v841 = vld [vmem:[%s3 + $0x5c] sm:$0xf]
  %v842 = vld [vmem:[%s3 + $0x60] sm:$0xf]
  %v843 = vld [vmem:[%s3 + $0x64] sm:$0xf]
  %v844 = vld [vmem:[%s3 + $0x68] sm:$0xf]
  %v845 = vld [vmem:[%s3 + $0x6c] sm:$0xf]
  %v846 = vld [vmem:[%s3 + $0x70] sm:$0xf]
  %v847 = vld [vmem:[%s3 + $0x74] sm:$0xf]
  %v848 = vld [vmem:[%s3 + $0x78] sm:$0xf]
  %v849 = vld [vmem:[%s3 + $0x7c] sm:$0xf]
  %v850 = vld [vmem:[%s4] sm:$0x1]
  %v852 = vperm.slane %v850, 0
  %v886 = vunpack.c.l.b16 %v818
  %v887 = vunpack.c.l.b16 %v819
  %v888 = vunpack.c.l.b16 %v820
  %v889 = vunpack.c.l.b16 %v821
  %v890 = vunpack.c.l.b16 %v822
  %v891 = vunpack.c.l.b16 %v823
  %v892 = vunpack.c.l.b16 %v824
  %v893 = vunpack.c.l.b16 %v825
  %v894 = vunpack.c.l.b16 %v826
  %v895 = vunpack.c.l.b16 %v827
  %v896 = vunpack.c.l.b16 %v828
  %v897 = vunpack.c.l.b16 %v829
  %v898 = vunpack.c.l.b16 %v830
  %v899 = vunpack.c.l.b16 %v831
  %v900 = vunpack.c.l.b16 %v832
  %v901 = vunpack.c.l.b16 %v833
  %v902 = vunpack.c.l.b16 %v834
  %v903 = vunpack.c.l.b16 %v835
  %v904 = vunpack.c.l.b16 %v836
  %v905 = vunpack.c.l.b16 %v837
  %v906 = vunpack.c.l.b16 %v838
  %v907 = vunpack.c.l.b16 %v839
  %v908 = vunpack.c.l.b16 %v840
  %v909 = vunpack.c.l.b16 %v841
  %v910 = vunpack.c.l.b16 %v842
  %v911 = vunpack.c.l.b16 %v843
  %v912 = vunpack.c.l.b16 %v844
  %v913 = vunpack.c.l.b16 %v845
  %v914 = vunpack.c.l.b16 %v846
  %v915 = vunpack.c.l.b16 %v847
  %v916 = vunpack.c.l.b16 %v848
  %v917 = vunpack.c.l.b16 %v849
  %v918 = vpack.c.b16 %v887, %v886
  %v919 = vpack.c.b16 %v889, %v888
  %v920 = vpack.c.b16 %v891, %v890
  %v921 = vpack.c.b16 %v893, %v892
  %v922 = vpack.c.b16 %v895, %v894
  %v923 = vpack.c.b16 %v897, %v896
  %v924 = vpack.c.b16 %v899, %v898
  %v925 = vpack.c.b16 %v901, %v900
  %v926 = vpack.c.b16 %v903, %v902
  %v927 = vpack.c.b16 %v905, %v904
  %v928 = vpack.c.b16 %v907, %v906
  %v929 = vpack.c.b16 %v909, %v908
  %v930 = vpack.c.b16 %v911, %v910
  %v931 = vpack.c.b16 %v913, %v912
  %v932 = vpack.c.b16 %v915, %v914
  %v933 = vpack.c.b16 %v917, %v916
  %950 = vmatpush.bf16.msra.mxu0 %v925
  %951 = vmatpush.bf16.msra.mxu0 %v924
  %952 = vmatpush.bf16.msra.mxu0 %v923
  %953 = vmatpush.bf16.msra.mxu0 %v922
  %954 = vmatpush.bf16.msra.mxu0 %v921
  %955 = vmatpush.bf16.msra.mxu0 %v920
  %956 = vmatpush.bf16.msra.mxu0 %v919
  %957 = vmatpush.bf16.msra.mxu0 %v918
  %958 = vmatmul.bf16.gmra.mxu0 %v816
  %v959 = vpop.f32.mrf.mxu0
  %v960 = vadd.f32 %v852, %v959
  %v961 = vpop.f32.mrf.mxu0
  %v962 = vadd.f32 %v852, %v961
  %963 = vdwg.mxu0
  %964 = vmatpush.bf16.msra.mxu0 %v933
  %965 = vmatpush.bf16.msra.mxu0 %v932
  %966 = vmatpush.bf16.msra.mxu0 %v931
  %967 = vmatpush.bf16.msra.mxu0 %v930
  %968 = vmatpush.bf16.msra.mxu0 %v929
  %969 = vmatpush.bf16.msra.mxu0 %v928
  %970 = vmatpush.bf16.msra.mxu0 %v927
  %971 = vmatpush.bf16.msra.mxu0 %v926
  %972 = vmatmul.bf16.gmra.mxu0 %v817
  %v973 = vpop.f32.mrf.mxu0
  %v974 = vadd.f32 %v960, %v973
  %v975 = vpop.f32.mrf.mxu0
  %v976 = vadd.f32 %v962, %v975
  %977 = vdwg.mxu0
  %v978 = vmax.f32 %v974, 0.0
  %v979 = vmax.f32 %v976, 0.0
  %v980 = vpack.c.bf16 %v979, %v978
  %v981 = vld [vmem:[%s5] sm:$0xf]
  %v982 = vld [vmem:[%s5 + $0x4] sm:$0xf]
  %v983 = vld [vmem:[%s5 + $0x8] sm:$0xf]
  %v984 = vld [vmem:[%s5 + $0xc] sm:$0xf]
  %v985 = vld [vmem:[%s5 + $0x10] sm:$0xf]
  %v986 = vld [vmem:[%s5 + $0x14] sm:$0xf]
  %v987 = vld [vmem:[%s5 + $0x18] sm:$0xf]
  %v988 = vld [vmem:[%s5 + $0x1c] sm:$0xf]
  %v989 = vld [vmem:[%s5 + $0x20] sm:$0xf]
  %v990 = vld [vmem:[%s5 + $0x24] sm:$0xf]
  %v991 = vld [vmem:[%s5 + $0x28] sm:$0xf]
  %v992 = vld [vmem:[%s5 + $0x2c] sm:$0xf]
  %v993 = vld [vmem:[%s5 + $0x30] sm:$0xf]
  %v994 = vld [vmem:[%s5 + $0x34] sm:$0xf]
  %v995 = vld [vmem:[%s5 + $0x38] sm:$0xf]
  %v996 = vld [vmem:[%s5 + $0x3c] sm:$0xf]
  %v997 = vld [vmem:[%s6] sm:$0x1]
  %v999 = vperm.slane %v997, 0
  %v1017 = vunpack.c.l.b16 %v981
  %v1018 = vunpack.c.l.b16 %v982
  %v1019 = vunpack.c.l.b16 %v983
  %v1020 = vunpack.c.l.b16 %v984
  %v1021 = vunpack.c.l.b16 %v985
  %v1022 = vunpack.c.l.b16 %v986
  %v1023 = vunpack.c.l.b16 %v987
  %v1024 = vunpack.c.l.b16 %v988
  %v1025 = vunpack.c.l.b16 %v989
  %v1026 = vunpack.c.l.b16 %v990
  %v1027 = vunpack.c.l.b16 %v991
  %v1028 = vunpack.c.l.b16 %v992
  %v1029 = vunpack.c.l.b16 %v993
  %v1030 = vunpack.c.l.b16 %v994
  %v1031 = vunpack.c.l.b16 %v995
  %v1032 = vunpack.c.l.b16 %v996
  %v1033 = vpack.c.b16 %v1018, %v1017
  %v1034 = vpack.c.b16 %v1020, %v1019
  %v1035 = vpack.c.b16 %v1022, %v1021
  %v1036 = vpack.c.b16 %v1024, %v1023
  %v1037 = vpack.c.b16 %v1026, %v1025
  %v1038 = vpack.c.b16 %v1028, %v1027
  %v1039 = vpack.c.b16 %v1030, %v1029
  %v1040 = vpack.c.b16 %v1032, %v1031
  %1049 = vmatpush.bf16.msra.mxu0 %v1040
  %1050 = vmatpush.bf16.msra.mxu0 %v1039
  %1051 = vmatpush.bf16.msra.mxu0 %v1038
  %1052 = vmatpush.bf16.msra.mxu0 %v1037
  %1053 = vmatpush.bf16.msra.mxu0 %v1036
  %1054 = vmatpush.bf16.msra.mxu0 %v1035
  %1055 = vmatpush.bf16.msra.mxu0 %v1034
  %1056 = vmatpush.bf16.msra.mxu0 %v1033
  %1057 = vmatmul.bf16.gmra.mxu0 %v980
  %v1058 = vpop.f32.mrf.mxu0
  %v1059 = vadd.f32 %v999, %v1058
  %v1060 = vpop.f32.mrf.mxu0
  %v1061 = vadd.f32 %v999, %v1060
  %1062 = vdwg.mxu0
  %v1063 = vpack.c.bf16 %v1059, %v1059
  %v1064 = vpack.c.bf16 %v1061, %v1061
  %1065 = vst [vmem:[%s7] sm:$0xf] %v1063
  %1066 = vst [vmem:[%s7 + $0x4] sm:$0xf] %v1064
  // Predicated region
  $region30: #{clip_mlp.1} parent=0 // pred_check
    _
  $region31: #{clip_mlp.1} parent=0 // pred_check_branch
    %1068 = sbr.rel (0) target = $region33
  $region32: #{clip_mlp.1} parent=0 // pred_region
    _
  $region33: #{clip_mlp.1} parent=0 // pred_fallthru
    _
  // Predicated region
  $region34: #{clip_mlp.1} parent=0 // pred_check
    _
  $region35: #{clip_mlp.1} parent=0 // pred_check_branch
    %1070 = sbr.rel (0) target = $region37
  $region36: #{clip_mlp.1} parent=0 // pred_region
    _
  $region37: #{clip_mlp.1} parent=0 // pred_fallthru
    _

</llo_original>
